<compile_context>
chip_gen: v6e
topology: v6e:2x2x1
jax: 0.10.0
libtpu: 0.0.40
codegen_flags: <defaults>
</compile_context>

<pallas_src>
import math

import jax
import jax.numpy as jnp
from jax.experimental import pallas as pl
from jax.experimental.pallas import tpu as pltpu

BN_EPS = 1e-5
LANE = 128
SUBLANE = 8


def _round_up(n, m):
    return ((n + m - 1) // m) * m


# ----------------------------------------------------------------------------
# Fused Pallas kernel: entire 6-layer DDM forward for one batch tile
# ----------------------------------------------------------------------------
def _sigmoid(y):
    # single EUP op (tanh) + cheap VALU mul/add; exact sigmoid.
    return 0.5 * (jnp.tanh(0.5 * y) + 1.0)


def _ddm_fused_kernel(x_ref,
                      w1, s1, w2, s2, w3, s3, w4, s4, w5, s5, w6, s6,
                      o_ref):
    """o = (...sigmoid(x @ W1' + b1')... ) @ W6' + b6'   (last layer: no act)."""
    def layer(h_f32, w_ref, shift_ref, act):
        # MXU in bf16, accumulate in f32; bias-add / activation in f32.
        y = jnp.dot(h_f32.astype(jnp.bfloat16), w_ref[...],
                    preferred_element_type=jnp.float32)
        y = y + shift_ref[...]
        return _sigmoid(y) if act else y

    h = x_ref[...]
    h = layer(h, w1, s1, True)
    h = layer(h, w2, s2, True)
    h = layer(h, w3, s3, True)
    h = layer(h, w4, s4, True)
    h = layer(h, w5, s5, True)
    h = layer(h, w6, s6, False)   # final: Linear + BatchNorm, no activation
    o_ref[...] = h.astype(o_ref.dtype)


def ddm_forward(params, x, m_tile=512):
    """x: (B, n_inputs) f32  ->  (B, n_outputs) f32."""
    B, n_in = x.shape
    n_out = params["n_outputs"]
    n_out_pad = params["n_outputs_padded"]

    # batch tile: multiple of the f32 sublane count (8), capped for v7x VMEM.
    m_tile = min(m_tile, _round_up(B, SUBLANE))
    b_pad = _round_up(B, m_tile)
    if b_pad != B:
        x = jnp.pad(x, ((0, b_pad - B), (0, 0)))
    grid = (b_pad // m_tile,)

    flat = []
    for w, s in params["layers"]:
        flat += [w, s]

    x_spec = pl.BlockSpec((m_tile, n_in), lambda i: (i, 0))
    # constant index_map -> weights/shifts DMA'd once, VMEM-resident across steps
    const_specs = [pl.BlockSpec(a.shape, lambda i: (0, 0)) for a in flat]
    out_spec = pl.BlockSpec((m_tile, n_out_pad), lambda i: (i, 0))

    out = pl.pallas_call(
        _ddm_fused_kernel,
        out_shape=jax.ShapeDtypeStruct((b_pad, n_out_pad), jnp.float32),
        grid=grid,
        in_specs=[x_spec] + const_specs,
        out_specs=out_spec,
        compiler_params=pltpu.CompilerParams(
            dimension_semantics=("parallel",)),
    )(x, *flat)
    return out[:B, :n_out]


# ----------------------------------------------------------------------------
# Deterministic parameter construction (matches PyTorch init distributions)
# ----------------------------------------------------------------------------
def _linear_xavier(key, fan_in, fan_out):
    kw, kb = jax.random.split(key)
    bound = math.sqrt(6.0 / (fan_in + fan_out))          # xavier_uniform_
    # weight stored pre-transposed: (fan_in, fan_out)
    w = jax.random.uniform(kw, (fan_in, fan_out), jnp.float32, -bound, bound)
    b_bound = 1.0 / math.sqrt(fan_in)                    # default Linear bias init
    b = jax.random.uniform(kb, (fan_out,), jnp.float32, -b_bound, b_bound)
    return w, b


def _fold_bn(w, b):
    # BatchNorm1d at init, eval mode: gamma=1, beta=0, running mean=0, var=1
    # TODO(synk): for a trained model, fold the actual running stats / affine params.
    scale = 1.0 / math.sqrt(1.0 + BN_EPS)
    return w * scale, (b * scale).reshape(1, -1)


def build_ddm(key, n_inputs=20, n_outputs=25):
    dims = [n_inputs, 256, 256, 256, 128, 64, n_outputs]
    ks = jax.random.split(key, len(dims) - 1)
    raw = []
    for i in range(len(dims) - 1):
        w, b = _linear_xavier(ks[i], dims[i], dims[i + 1])
        raw.append(_fold_bn(w, b))   # (W' f32 (in,out), shift f32 (1,out))

    def pad_cols(w, s, n_to):
        return (jnp.pad(w, ((0, 0), (0, n_to - w.shape[1]))),
                jnp.pad(s, ((0, 0), (0, n_to - s.shape[1]))))

    def pad_rows(w, n_to):
        return jnp.pad(w, ((0, n_to - w.shape[0]), (0, 0)))

    # Pad the 64-wide hop to 128 lanes (exact: next layer's padded rows are zero,
    # so the sigmoid(0)=0.5 padded activations contribute nothing).
    w4, s4 = pad_cols(*raw[4], LANE)           # layer 4: 128 -> 64  ==> 128 -> 128
    raw[4] = (w4, s4)
    w5, s5 = raw[5]                            # layer 5: 64 -> n_outputs
    w5 = pad_rows(w5, LANE)
    n_out_pad = _round_up(n_outputs, LANE)     # lane-dense output store
    w5, s5 = pad_cols(w5, s5, n_out_pad)
    raw[5] = (w5, s5)

    # weights in bf16 (MXU fast path, half the VMEM); shifts stay f32
    layers = [(w.astype(jnp.bfloat16), s) for (w, s) in raw]
    return dict(layers=layers, n_outputs=n_outputs, n_outputs_padded=n_out_pad)


# ----------------------------------------------------------------------------
# Pure-JAX reference (same bf16 quantization) for a correctness check
# ----------------------------------------------------------------------------
def _ref_forward(params, x):
    h = x
    n = len(params["layers"])
    for idx, (w, s) in enumerate(params["layers"]):
        y = jnp.dot(h.astype(jnp.bfloat16), w,
                    preferred_element_type=jnp.float32) + s
        h = jax.nn.sigmoid(y) if idx < n - 1 else y
    return h[:, :params["n_outputs"]]


# ----------------------------------------------------------------------------
if __name__ == "__main__":
    key = jax.random.PRNGKey(0)
    k_param, k_x = jax.random.split(key)

    params = build_ddm(k_param, n_inputs=20, n_outputs=25)

    B = 8
    x = jax.random.normal(k_x, (B, 20), jnp.float32)

    out = ddm_forward(params, x)
    out = jax.block_until_ready(out)

    assert out.shape == (B, 25)
    assert bool(jnp.all(jnp.isfinite(out)))

    ref = _ref_forward(params, x)
    assert bool(jnp.allclose(out, ref, atol=1e-2, rtol=1e-2))

    print("KERNEL_OK")
</pallas_src>

<mosaic_0001>
module attributes {stable_mosaic.version = 11 : i64} {
  func.func @_ddm_fused_kernel(%arg0: i32, %arg1: memref<8x20xf32, #tpu.memory_space<vmem>>, %arg2: memref<20x256xbf16, #tpu.memory_space<vmem>>, %arg3: memref<1x256xf32, #tpu.memory_space<vmem>>, %arg4: memref<256x256xbf16, #tpu.memory_space<vmem>>, %arg5: memref<1x256xf32, #tpu.memory_space<vmem>>, %arg6: memref<256x256xbf16, #tpu.memory_space<vmem>>, %arg7: memref<1x256xf32, #tpu.memory_space<vmem>>, %arg8: memref<256x128xbf16, #tpu.memory_space<vmem>>, %arg9: memref<1x128xf32, #tpu.memory_space<vmem>>, %arg10: memref<128x128xbf16, #tpu.memory_space<vmem>>, %arg11: memref<1x128xf32, #tpu.memory_space<vmem>>, %arg12: memref<128x128xbf16, #tpu.memory_space<vmem>>, %arg13: memref<1x128xf32, #tpu.memory_space<vmem>>, %arg14: memref<8x128xf32, #tpu.memory_space<vmem>>) attributes {dimension_semantics = [#tpu.dimension_semantics<parallel>], iteration_bounds = array<i64: 1>, scalar_prefetch = 0 : i64, scratch_operands = 0 : i64, tpu.core_type = #tpu.core_type<tc>, window_params = [{transform_indices = @transform_0, window_bounds = array<i64: 8, 20>}, {pipeline_mode = #tpu.pipeline_mode<synchronous>, transform_indices = @transform_1, window_bounds = array<i64: 20, 256>}, {pipeline_mode = #tpu.pipeline_mode<synchronous>, transform_indices = @transform_2, window_bounds = array<i64: 1, 256>}, {pipeline_mode = #tpu.pipeline_mode<synchronous>, transform_indices = @transform_3, window_bounds = array<i64: 256, 256>}, {pipeline_mode = #tpu.pipeline_mode<synchronous>, transform_indices = @transform_4, window_bounds = array<i64: 1, 256>}, {pipeline_mode = #tpu.pipeline_mode<synchronous>, transform_indices = @transform_5, window_bounds = array<i64: 256, 256>}, {pipeline_mode = #tpu.pipeline_mode<synchronous>, transform_indices = @transform_6, window_bounds = array<i64: 1, 256>}, {pipeline_mode = #tpu.pipeline_mode<synchronous>, transform_indices = @transform_7, window_bounds = array<i64: 256, 128>}, {pipeline_mode = #tpu.pipeline_mode<synchronous>, transform_indices = @transform_8, window_bounds = array<i64: 1, 128>}, {pipeline_mode = #tpu.pipeline_mode<synchronous>, transform_indices = @transform_9, window_bounds = array<i64: 128, 128>}, {pipeline_mode = #tpu.pipeline_mode<synchronous>, transform_indices = @transform_10, window_bounds = array<i64: 1, 128>}, {pipeline_mode = #tpu.pipeline_mode<synchronous>, transform_indices = @transform_11, window_bounds = array<i64: 128, 128>}, {pipeline_mode = #tpu.pipeline_mode<synchronous>, transform_indices = @transform_12, window_bounds = array<i64: 1, 128>}, {transform_indices = @transform_13, window_bounds = array<i64: 8, 128>}]} {
    %c0 = arith.constant 0 : index
    %c0_0 = arith.constant 0 : index
    %0 = vector.load %arg1[%c0, %c0_0] : memref<8x20xf32, #tpu.memory_space<vmem>>, vector<8x20xf32>
    %1 = arith.truncf %0 : vector<8x20xf32> to vector<8x20xbf16>
    %c0_1 = arith.constant 0 : index
    %c0_2 = arith.constant 0 : index
    %2 = vector.load %arg2[%c0_1, %c0_2] : memref<20x256xbf16, #tpu.memory_space<vmem>>, vector<20x256xbf16>
    %cst = arith.constant dense<0.000000e+00> : vector<8x256xf32>
    %3 = tpu.matmul %1, %2, %cst {dimension_numbers = #tpu.dot_dimension_numbers<[1], [0], [0], [1], [0, 0, 1, 1], [], []>} : vector<8x20xbf16>, vector<20x256xbf16>, vector<8x256xf32> -> vector<8x256xf32>
    %c0_3 = arith.constant 0 : index
    %c0_4 = arith.constant 0 : index
    %4 = vector.load %arg3[%c0_3, %c0_4] : memref<1x256xf32, #tpu.memory_space<vmem>>, vector<1x256xf32>
    %5 = vector.broadcast %4 : vector<1x256xf32> to vector<8x256xf32>
    %6 = arith.addf %3, %5 : vector<8x256xf32>
    %cst_5 = arith.constant 5.000000e-01 : f32
    %7 = vector.broadcast %cst_5 : f32 to vector<8x256xf32>
    %8 = arith.mulf %7, %6 : vector<8x256xf32>
    %9 = math.tanh %8 : vector<8x256xf32>
    %cst_6 = arith.constant 1.000000e+00 : f32
    %10 = vector.broadcast %cst_6 : f32 to vector<8x256xf32>
    %11 = arith.addf %9, %10 : vector<8x256xf32>
    %cst_7 = arith.constant 5.000000e-01 : f32
    %12 = vector.broadcast %cst_7 : f32 to vector<8x256xf32>
    %13 = arith.mulf %12, %11 : vector<8x256xf32>
    %14 = arith.truncf %13 : vector<8x256xf32> to vector<8x256xbf16>
    %c0_8 = arith.constant 0 : index
    %c0_9 = arith.constant 0 : index
    %15 = vector.load %arg4[%c0_8, %c0_9] : memref<256x256xbf16, #tpu.memory_space<vmem>>, vector<256x256xbf16>
    %cst_10 = arith.constant dense<0.000000e+00> : vector<8x256xf32>
    %16 = tpu.matmul %14, %15, %cst_10 {dimension_numbers = #tpu.dot_dimension_numbers<[1], [0], [0], [1], [0, 0, 1, 1], [], []>} : vector<8x256xbf16>, vector<256x256xbf16>, vector<8x256xf32> -> vector<8x256xf32>
    %c0_11 = arith.constant 0 : index
    %c0_12 = arith.constant 0 : index
    %17 = vector.load %arg5[%c0_11, %c0_12] : memref<1x256xf32, #tpu.memory_space<vmem>>, vector<1x256xf32>
    %18 = vector.broadcast %17 : vector<1x256xf32> to vector<8x256xf32>
    %19 = arith.addf %16, %18 : vector<8x256xf32>
    %cst_13 = arith.constant 5.000000e-01 : f32
    %20 = vector.broadcast %cst_13 : f32 to vector<8x256xf32>
    %21 = arith.mulf %20, %19 : vector<8x256xf32>
    %22 = math.tanh %21 : vector<8x256xf32>
    %cst_14 = arith.constant 1.000000e+00 : f32
    %23 = vector.broadcast %cst_14 : f32 to vector<8x256xf32>
    %24 = arith.addf %22, %23 : vector<8x256xf32>
    %cst_15 = arith.constant 5.000000e-01 : f32
    %25 = vector.broadcast %cst_15 : f32 to vector<8x256xf32>
    %26 = arith.mulf %25, %24 : vector<8x256xf32>
    %27 = arith.truncf %26 : vector<8x256xf32> to vector<8x256xbf16>
    %c0_16 = arith.constant 0 : index
    %c0_17 = arith.constant 0 : index
    %28 = vector.load %arg6[%c0_16, %c0_17] : memref<256x256xbf16, #tpu.memory_space<vmem>>, vector<256x256xbf16>
    %cst_18 = arith.constant dense<0.000000e+00> : vector<8x256xf32>
    %29 = tpu.matmul %27, %28, %cst_18 {dimension_numbers = #tpu.dot_dimension_numbers<[1], [0], [0], [1], [0, 0, 1, 1], [], []>} : vector<8x256xbf16>, vector<256x256xbf16>, vector<8x256xf32> -> vector<8x256xf32>
    %c0_19 = arith.constant 0 : index
    %c0_20 = arith.constant 0 : index
    %30 = vector.load %arg7[%c0_19, %c0_20] : memref<1x256xf32, #tpu.memory_space<vmem>>, vector<1x256xf32>
    %31 = vector.broadcast %30 : vector<1x256xf32> to vector<8x256xf32>
    %32 = arith.addf %29, %31 : vector<8x256xf32>
    %cst_21 = arith.constant 5.000000e-01 : f32
    %33 = vector.broadcast %cst_21 : f32 to vector<8x256xf32>
    %34 = arith.mulf %33, %32 : vector<8x256xf32>
    %35 = math.tanh %34 : vector<8x256xf32>
    %cst_22 = arith.constant 1.000000e+00 : f32
    %36 = vector.broadcast %cst_22 : f32 to vector<8x256xf32>
    %37 = arith.addf %35, %36 : vector<8x256xf32>
    %cst_23 = arith.constant 5.000000e-01 : f32
    %38 = vector.broadcast %cst_23 : f32 to vector<8x256xf32>
    %39 = arith.mulf %38, %37 : vector<8x256xf32>
    %40 = arith.truncf %39 : vector<8x256xf32> to vector<8x256xbf16>
    %c0_24 = arith.constant 0 : index
    %c0_25 = arith.constant 0 : index
    %41 = vector.load %arg8[%c0_24, %c0_25] : memref<256x128xbf16, #tpu.memory_space<vmem>>, vector<256x128xbf16>
    %cst_26 = arith.constant dense<0.000000e+00> : vector<8x128xf32>
    %42 = tpu.matmul %40, %41, %cst_26 {dimension_numbers = #tpu.dot_dimension_numbers<[1], [0], [0], [1], [0, 0, 1, 1], [], []>} : vector<8x256xbf16>, vector<256x128xbf16>, vector<8x128xf32> -> vector<8x128xf32>
    %c0_27 = arith.constant 0 : index
    %c0_28 = arith.constant 0 : index
    %43 = vector.load %arg9[%c0_27, %c0_28] : memref<1x128xf32, #tpu.memory_space<vmem>>, vector<1x128xf32>
    %44 = vector.broadcast %43 : vector<1x128xf32> to vector<8x128xf32>
    %45 = arith.addf %42, %44 : vector<8x128xf32>
    %cst_29 = arith.constant 5.000000e-01 : f32
    %46 = vector.broadcast %cst_29 : f32 to vector<8x128xf32>
    %47 = arith.mulf %46, %45 : vector<8x128xf32>
    %48 = math.tanh %47 : vector<8x128xf32>
    %cst_30 = arith.constant 1.000000e+00 : f32
    %49 = vector.broadcast %cst_30 : f32 to vector<8x128xf32>
    %50 = arith.addf %48, %49 : vector<8x128xf32>
    %cst_31 = arith.constant 5.000000e-01 : f32
    %51 = vector.broadcast %cst_31 : f32 to vector<8x128xf32>
    %52 = arith.mulf %51, %50 : vector<8x128xf32>
    %53 = arith.truncf %52 : vector<8x128xf32> to vector<8x128xbf16>
    %c0_32 = arith.constant 0 : index
    %c0_33 = arith.constant 0 : index
    %54 = vector.load %arg10[%c0_32, %c0_33] : memref<128x128xbf16, #tpu.memory_space<vmem>>, vector<128x128xbf16>
    %cst_34 = arith.constant dense<0.000000e+00> : vector<8x128xf32>
    %55 = tpu.matmul %53, %54, %cst_34 {dimension_numbers = #tpu.dot_dimension_numbers<[1], [0], [0], [1], [0, 0, 1, 1], [], []>} : vector<8x128xbf16>, vector<128x128xbf16>, vector<8x128xf32> -> vector<8x128xf32>
    %c0_35 = arith.constant 0 : index
    %c0_36 = arith.constant 0 : index
    %56 = vector.load %arg11[%c0_35, %c0_36] : memref<1x128xf32, #tpu.memory_space<vmem>>, vector<1x128xf32>
    %57 = vector.broadcast %56 : vector<1x128xf32> to vector<8x128xf32>
    %58 = arith.addf %55, %57 : vector<8x128xf32>
    %cst_37 = arith.constant 5.000000e-01 : f32
    %59 = vector.broadcast %cst_37 : f32 to vector<8x128xf32>
    %60 = arith.mulf %59, %58 : vector<8x128xf32>
    %61 = math.tanh %60 : vector<8x128xf32>
    %cst_38 = arith.constant 1.000000e+00 : f32
    %62 = vector.broadcast %cst_38 : f32 to vector<8x128xf32>
    %63 = arith.addf %61, %62 : vector<8x128xf32>
    %cst_39 = arith.constant 5.000000e-01 : f32
    %64 = vector.broadcast %cst_39 : f32 to vector<8x128xf32>
    %65 = arith.mulf %64, %63 : vector<8x128xf32>
    %66 = arith.truncf %65 : vector<8x128xf32> to vector<8x128xbf16>
    %c0_40 = arith.constant 0 : index
    %c0_41 = arith.constant 0 : index
    %67 = vector.load %arg12[%c0_40, %c0_41] : memref<128x128xbf16, #tpu.memory_space<vmem>>, vector<128x128xbf16>
    %cst_42 = arith.constant dense<0.000000e+00> : vector<8x128xf32>
    %68 = tpu.matmul %66, %67, %cst_42 {dimension_numbers = #tpu.dot_dimension_numbers<[1], [0], [0], [1], [0, 0, 1, 1], [], []>} : vector<8x128xbf16>, vector<128x128xbf16>, vector<8x128xf32> -> vector<8x128xf32>
    %c0_43 = arith.constant 0 : index
    %c0_44 = arith.constant 0 : index
    %69 = vector.load %arg13[%c0_43, %c0_44] : memref<1x128xf32, #tpu.memory_space<vmem>>, vector<1x128xf32>
    %70 = vector.broadcast %69 : vector<1x128xf32> to vector<8x128xf32>
    %71 = arith.addf %68, %70 : vector<8x128xf32>
    %c0_45 = arith.constant 0 : index
    %c0_46 = arith.constant 0 : index
    %72 = vector.load %arg14[%c0_45, %c0_46] : memref<8x128xf32, #tpu.memory_space<vmem>>, vector<8x128xf32>
    tpu.vector_store %arg14[%c0_45, %c0_46], %71 {strides = array<i32>} : memref<8x128xf32, #tpu.memory_space<vmem>>, vector<8x128xf32>,
    return
  }
  func.func @transform_0(%arg0: i32) -> (i32, i32) {
    %c0_i32 = arith.constant 0 : i32
    %c0_i32_0 = arith.constant 0 : i32
    return %arg0, %c0_i32 : i32, i32
  }
  func.func @transform_1(%arg0: i32) -> (i32, i32) {
    %c0_i32 = arith.constant 0 : i32
    %c0_i32_0 = arith.constant 0 : i32
    %c0_i32_1 = arith.constant 0 : i32
    return %c0_i32, %c0_i32_0 : i32, i32
  }
  func.func @transform_2(%arg0: i32) -> (i32, i32) {
    %c0_i32 = arith.constant 0 : i32
    %c0_i32_0 = arith.constant 0 : i32
    %c0_i32_1 = arith.constant 0 : i32
    return %c0_i32, %c0_i32_0 : i32, i32
  }
  func.func @transform_3(%arg0: i32) -> (i32, i32) {
    %c0_i32 = arith.constant 0 : i32
    %c0_i32_0 = arith.constant 0 : i32
    %c0_i32_1 = arith.constant 0 : i32
    return %c0_i32, %c0_i32_0 : i32, i32
  }
  func.func @transform_4(%arg0: i32) -> (i32, i32) {
    %c0_i32 = arith.constant 0 : i32
    %c0_i32_0 = arith.constant 0 : i32
    %c0_i32_1 = arith.constant 0 : i32
    return %c0_i32, %c0_i32_0 : i32, i32
  }
  func.func @transform_5(%arg0: i32) -> (i32, i32) {
    %c0_i32 = arith.constant 0 : i32
    %c0_i32_0 = arith.constant 0 : i32
    %c0_i32_1 = arith.constant 0 : i32
    return %c0_i32, %c0_i32_0 : i32, i32
  }
  func.func @transform_6(%arg0: i32) -> (i32, i32) {
    %c0_i32 = arith.constant 0 : i32
    %c0_i32_0 = arith.constant 0 : i32
    %c0_i32_1 = arith.constant 0 : i32
    return %c0_i32, %c0_i32_0 : i32, i32
  }
  func.func @transform_7(%arg0: i32) -> (i32, i32) {
    %c0_i32 = arith.constant 0 : i32
    %c0_i32_0 = arith.constant 0 : i32
    %c0_i32_1 = arith.constant 0 : i32
    return %c0_i32, %c0_i32_0 : i32, i32
  }
  func.func @transform_8(%arg0: i32) -> (i32, i32) {
    %c0_i32 = arith.constant 0 : i32
    %c0_i32_0 = arith.constant 0 : i32
    %c0_i32_1 = arith.constant 0 : i32
    return %c0_i32, %c0_i32_0 : i32, i32
  }
  func.func @transform_9(%arg0: i32) -> (i32, i32) {
    %c0_i32 = arith.constant 0 : i32
    %c0_i32_0 = arith.constant 0 : i32
    %c0_i32_1 = arith.constant 0 : i32
    return %c0_i32, %c0_i32_0 : i32, i32
  }
  func.func @transform_10(%arg0: i32) -> (i32, i32) {
    %c0_i32 = arith.constant 0 : i32
    %c0_i32_0 = arith.constant 0 : i32
    %c0_i32_1 = arith.constant 0 : i32
    return %c0_i32, %c0_i32_0 : i32, i32
  }
  func.func @transform_11(%arg0: i32) -> (i32, i32) {
    %c0_i32 = arith.constant 0 : i32
    %c0_i32_0 = arith.constant 0 : i32
    %c0_i32_1 = arith.constant 0 : i32
    return %c0_i32, %c0_i32_0 : i32, i32
  }
  func.func @transform_12(%arg0: i32) -> (i32, i32) {
    %c0_i32 = arith.constant 0 : i32
    %c0_i32_0 = arith.constant 0 : i32
    %c0_i32_1 = arith.constant 0 : i32
    return %c0_i32, %c0_i32_0 : i32, i32
  }
  func.func @transform_13(%arg0: i32) -> (i32, i32) {
    %c0_i32 = arith.constant 0 : i32
    %c0_i32_0 = arith.constant 0 : i32
    return %arg0, %c0_i32 : i32, i32
  }
}

</mosaic_0001>

<llo_original>
// kernel: tpu_custom_call.1
$region0: #{tpu_custom_call.1}
  #allocation0 [shape = 'u32[]', space=smem, size = 0x4, offset = 0x4, fixed_abs, tag = 'smem constant byte address 0x4 - core index']
  #allocation1 [shape = 'u32[144,128]{1,0:T(1,128)}', space=vmem, size = 0x12000, scoped, tag = 'internal scratch']
  %s0 = inlined_call_operand.hbm [shape: f32[8,20], index: 0, kind: input, shape index: {}]
  %s1 = inlined_call_operand.hbm [shape: bf16[20,256], index: 1, kind: input, shape index: {}]
  %s2 = inlined_call_operand.vmem [shape: f32[1,256], index: 2, kind: input, shape index: {}]
  %s3 = inlined_call_operand.hbm [shape: bf16[256,256], index: 3, kind: input, shape index: {}]
  %s4 = inlined_call_operand.vmem [shape: f32[1,256], index: 4, kind: input, shape index: {}]
  %s5 = inlined_call_operand.hbm [shape: bf16[256,256], index: 5, kind: input, shape index: {}]
  %s6 = inlined_call_operand.vmem [shape: f32[1,256], index: 6, kind: input, shape index: {}]
  %s7 = inlined_call_operand.hbm [shape: bf16[256,128], index: 7, kind: input, shape index: {}]
  %s8 = inlined_call_operand.vmem [shape: f32[1,128], index: 8, kind: input, shape index: {}]
  %s9 = inlined_call_operand.hbm [shape: bf16[128,128], index: 9, kind: input, shape index: {}]
  %s10 = inlined_call_operand.vmem [shape: f32[1,128], index: 10, kind: input, shape index: {}]
  %s11 = inlined_call_operand.hbm [shape: bf16[128,128], index: 11, kind: input, shape index: {}]
  %s12 = inlined_call_operand.vmem [shape: f32[1,128], index: 12, kind: input, shape index: {}]
  %s13 = inlined_call_operand.hbm [shape: f32[8,128], index: 13, kind: output, shape index: {}]
  %s14 = sld [smem:[#allocation0]]
  $region90: #{tpu_custom_call.1} parent=0
    _
  %s16 = ssub.s32 1, %s14
  %s17 = scalar_select 0, %s16, %s14
  $region1: #{tpu_custom_call.1} parent=0
    #allocation2 [shape = 'u8[4096]{0}', space=vmem, size = 0x1000, scoped, tag = 'input window, operand 0, single buffered']
    #allocation3 [shape = 's32[1]{0}', space=sflag, size = 0x4, scoped, tag = 'scoped memory for tpu_custom_call.1']
    #allocation4 [shape = 's32[1]{0}', space=sflag, size = 0x4, scoped, tag = 'scoped memory for tpu_custom_call.1']
    #allocation5 [shape = 'u8[12288]{0}', space=vmem, size = 0x3000, scoped, tag = 'input window, operand 1, single buffered']
    #allocation6 [shape = 's32[1]{0}', space=sflag, size = 0x4, scoped, tag = 'scoped memory for tpu_custom_call.1']
    #allocation7 [shape = 'u8[131072]{0}', space=vmem, size = 0x20000, scoped, tag = 'input window, operand 3, single buffered']
    #allocation8 [shape = 'u8[131072]{0}', space=vmem, size = 0x20000, scoped, tag = 'input window, operand 5, single buffered']
    #allocation9 [shape = 's32[1]{0}', space=sflag, size = 0x4, scoped, tag = 'scoped memory for tpu_custom_call.1']
    #allocation10 [shape = 'u8[65536]{0}', space=vmem, size = 0x10000, scoped, tag = 'input window, operand 7, single buffered']
    #allocation11 [shape = 'u8[32768]{0}', space=vmem, size = 0x8000, scoped, tag = 'input window, operand 9, single buffered']
    #allocation12 [shape = 's32[1]{0}', space=sflag, size = 0x4, scoped, tag = 'scoped memory for tpu_custom_call.1']
    #allocation13 [shape = 'u8[32768]{0}', space=vmem, size = 0x8000, scoped, tag = 'input window, operand 11, single buffered']
    #allocation14 [shape = 'u8[4096]{0}', space=vmem, size = 0x1000, scoped, tag = 'output window, operand 0, single buffered']
    %18 = vsyncpa [#allocation3], 0
    %19 = vsyncpa [#allocation6], 0
    %20 = vsyncpa [#allocation9], 0
    %21 = vsyncpa [#allocation12], 0
    %22 = vsyncpa [#allocation4], 0
    // Predicated region
    $region2: #{tpu_custom_call.1} parent=1 // pred_check
      _
    $region3: #{tpu_custom_call.1} parent=1 // pred_check_branch
      %24 = sbr.rel (0) target = $region5
    $region4: #{tpu_custom_call.1} parent=1 // pred_region
      %s26 = ssub.s32 128, 128
      %27 = vsyncadd [#allocation3], %s26
      %s29 = sshll.u32 [#allocation2], 4
      %s30 = int_to_ptr.vmem [resolvable:$true] %s29
      %32 = dma.hbm_to_vmem [thread:$0]  %s0, 128, %s30, [#allocation3]
    $region5: #{tpu_custom_call.1} parent=1 // pred_fallthru
      _
    // Predicated region
    $region6: #{tpu_custom_call.1} parent=1 // pred_check
      _
    $region7: #{tpu_custom_call.1} parent=1 // pred_check_branch
      %34 = sbr.rel (0) target = $region9
    $region8: #{tpu_custom_call.1} parent=1 // pred_region
      %s36 = ssub.s32 384, 384
      %37 = vsyncadd [#allocation6], %s36
      %s38 = sshll.u32 [#allocation5], 4
      %s39 = int_to_ptr.vmem [resolvable:$true] %s38
      %44 = dma.hbm_to_vmem [thread:$0]  %s1, 384, %s39, [#allocation6], 128, 128, 8
    $region9: #{tpu_custom_call.1} parent=1 // pred_fallthru
      _
    // Predicated region
    $region10: #{tpu_custom_call.1} parent=1 // pred_check
      _
    $region11: #{tpu_custom_call.1} parent=1 // pred_check_branch
      %46 = sbr.rel (0) target = $region13
    $region12: #{tpu_custom_call.1} parent=1 // pred_region
      _
    $region13: #{tpu_custom_call.1} parent=1 // pred_fallthru
      _
    // Predicated region
    $region14: #{tpu_custom_call.1} parent=1 // pred_check
      _
    $region15: #{tpu_custom_call.1} parent=1 // pred_check_branch
      %48 = sbr.rel (0) target = $region17
    $region16: #{tpu_custom_call.1} parent=1 // pred_region
      %s50 = ssub.s32 4096, 4096
      %51 = vsyncadd [#allocation6], %s50
      %s52 = sshll.u32 [#allocation7], 4
      %s53 = int_to_ptr.vmem [resolvable:$true] %s52
      %58 = dma.hbm_to_vmem [thread:$0]  %s3, 4096, %s53, [#allocation6], 128, 128, 8
    $region17: #{tpu_custom_call.1} parent=1 // pred_fallthru
      _
    // Predicated region
    $region18: #{tpu_custom_call.1} parent=1 // pred_check
      _
    $region19: #{tpu_custom_call.1} parent=1 // pred_check_branch
      %60 = sbr.rel (0) target = $region21
    $region20: #{tpu_custom_call.1} parent=1 // pred_region
      _
    $region21: #{tpu_custom_call.1} parent=1 // pred_fallthru
      _
    // Predicated region
    $region22: #{tpu_custom_call.1} parent=1 // pred_check
      _
    $region23: #{tpu_custom_call.1} parent=1 // pred_check_branch
      %62 = sbr.rel (0) target = $region25
    $region24: #{tpu_custom_call.1} parent=1 // pred_region
      %s64 = ssub.s32 4096, 4096
      %65 = vsyncadd [#allocation9], %s64
      %s66 = sshll.u32 [#allocation8], 4
      %s67 = int_to_ptr.vmem [resolvable:$true] %s66
      %72 = dma.hbm_to_vmem [thread:$0]  %s5, 4096, %s67, [#allocation9], 128, 128, 8
    $region25: #{tpu_custom_call.1} parent=1 // pred_fallthru
      _
    // Predicated region
    $region26: #{tpu_custom_call.1} parent=1 // pred_check
      _
    $region27: #{tpu_custom_call.1} parent=1 // pred_check_branch
      %74 = sbr.rel (0) target = $region29
    $region28: #{tpu_custom_call.1} parent=1 // pred_region
      _
    $region29: #{tpu_custom_call.1} parent=1 // pred_fallthru
      _
    // Predicated region
    $region30: #{tpu_custom_call.1} parent=1 // pred_check
      _
    $region31: #{tpu_custom_call.1} parent=1 // pred_check_branch
      %76 = sbr.rel (0) target = $region33
    $region32: #{tpu_custom_call.1} parent=1 // pred_region
      %s78 = ssub.s32 2048, 2048
      %79 = vsyncadd [#allocation9], %s78
      %s80 = sshll.u32 [#allocation10], 4
      %s81 = int_to_ptr.vmem [resolvable:$true] %s80
      %86 = dma.hbm_to_vmem [thread:$0]  %s7, 2048, %s81, [#allocation9], 64, 64, 4
    $region33: #{tpu_custom_call.1} parent=1 // pred_fallthru
      _
    // Predicated region
    $region34: #{tpu_custom_call.1} parent=1 // pred_check
      _
    $region35: #{tpu_custom_call.1} parent=1 // pred_check_branch
      %88 = sbr.rel (0) target = $region37
    $region36: #{tpu_custom_call.1} parent=1 // pred_region
      _
    $region37: #{tpu_custom_call.1} parent=1 // pred_fallthru
      _
    // Predicated region
    $region38: #{tpu_custom_call.1} parent=1 // pred_check
      _
    $region39: #{tpu_custom_call.1} parent=1 // pred_check_branch
      %90 = sbr.rel (0) target = $region41
    $region40: #{tpu_custom_call.1} parent=1 // pred_region
      %s92 = ssub.s32 1024, 1024
      %93 = vsyncadd [#allocation12], %s92
      %s94 = sshll.u32 [#allocation11], 4
      %s95 = int_to_ptr.vmem [resolvable:$true] %s94
      %100 = dma.hbm_to_vmem [thread:$0]  %s9, 1024, %s95, [#allocation12], 64, 64, 4
    $region41: #{tpu_custom_call.1} parent=1 // pred_fallthru
      _
    // Predicated region
    $region42: #{tpu_custom_call.1} parent=1 // pred_check
      _
    $region43: #{tpu_custom_call.1} parent=1 // pred_check_branch
      %102 = sbr.rel (0) target = $region45
    $region44: #{tpu_custom_call.1} parent=1 // pred_region
      _
    $region45: #{tpu_custom_call.1} parent=1 // pred_fallthru
      _
    // Predicated region
    $region46: #{tpu_custom_call.1} parent=1 // pred_check
      _
    $region47: #{tpu_custom_call.1} parent=1 // pred_check_branch
      %104 = sbr.rel (0) target = $region49
    $region48: #{tpu_custom_call.1} parent=1 // pred_region
      %s106 = ssub.s32 1024, 1024
      %107 = vsyncadd [#allocation12], %s106
      %s108 = sshll.u32 [#allocation13], 4
      %s109 = int_to_ptr.vmem [resolvable:$true] %s108
      %114 = dma.hbm_to_vmem [thread:$0]  %s11, 1024, %s109, [#allocation12], 64, 64, 4
    $region49: #{tpu_custom_call.1} parent=1 // pred_fallthru
      _
    // Predicated region
    $region50: #{tpu_custom_call.1} parent=1 // pred_check
      _
    $region51: #{tpu_custom_call.1} parent=1 // pred_check_branch
      %116 = sbr.rel (0) target = $region53
    $region52: #{tpu_custom_call.1} parent=1 // pred_region
      _
    $region53: #{tpu_custom_call.1} parent=1 // pred_fallthru
      _
    // Predicated region
    $region54: #{tpu_custom_call.1} parent=1 // pred_check
      _
    $region55: #{tpu_custom_call.1} parent=1 // pred_check_branch
      %118 = sbr.rel (0) target = $region57
    $region56: #{tpu_custom_call.1} parent=1 // pred_region
      %119 = dma.done [#allocation3], 128
    $region57: #{tpu_custom_call.1} parent=1 // pred_fallthru
      _
    // Predicated region
    $region58: #{tpu_custom_call.1} parent=1 // pred_check
      _
    $region59: #{tpu_custom_call.1} parent=1 // pred_check_branch
      %121 = sbr.rel (0) target = $region61
    $region60: #{tpu_custom_call.1} parent=1 // pred_region
      %122 = dma.done [#allocation6], 384
    $region61: #{tpu_custom_call.1} parent=1 // pred_fallthru
      _
    // Predicated region
    $region62: #{tpu_custom_call.1} parent=1 // pred_check
      _
    $region63: #{tpu_custom_call.1} parent=1 // pred_check_branch
      %124 = sbr.rel (0) target = $region65
    $region64: #{tpu_custom_call.1} parent=1 // pred_region
      %125 = dma.done [#allocation6], 4096
    $region65: #{tpu_custom_call.1} parent=1 // pred_fallthru
      _
    // Predicated region
    $region66: #{tpu_custom_call.1} parent=1 // pred_check
      _
    $region67: #{tpu_custom_call.1} parent=1 // pred_check_branch
      %127 = sbr.rel (0) target = $region69
    $region68: #{tpu_custom_call.1} parent=1 // pred_region
      %128 = dma.done [#allocation9], 4096
    $region69: #{tpu_custom_call.1} parent=1 // pred_fallthru
      _
    // Predicated region
    $region70: #{tpu_custom_call.1} parent=1 // pred_check
      _
    $region71: #{tpu_custom_call.1} parent=1 // pred_check_branch
      %130 = sbr.rel (0) target = $region73
    $region72: #{tpu_custom_call.1} parent=1 // pred_region
      %131 = dma.done [#allocation9], 2048
    $region73: #{tpu_custom_call.1} parent=1 // pred_fallthru
      _
    // Predicated region
    $region74: #{tpu_custom_call.1} parent=1 // pred_check
      _
    $region75: #{tpu_custom_call.1} parent=1 // pred_check_branch
      %133 = sbr.rel (0) target = $region77
    $region76: #{tpu_custom_call.1} parent=1 // pred_region
      %134 = dma.done [#allocation12], 1024
    $region77: #{tpu_custom_call.1} parent=1 // pred_fallthru
      _
    // Predicated region
    $region78: #{tpu_custom_call.1} parent=1 // pred_check
      _
    $region79: #{tpu_custom_call.1} parent=1 // pred_check_branch
      %136 = sbr.rel (0) target = $region81
    $region80: #{tpu_custom_call.1} parent=1 // pred_region
      %137 = dma.done [#allocation12], 1024
    $region81: #{tpu_custom_call.1} parent=1 // pred_fallthru
      _
    %v139 = vld [vmem:[#allocation2] sm:$0xff]
    %v140 = vpack.c.bf16 %v139, %v139
    %v141 = vld [vmem:[#allocation5] sm:$0xff]
    %v142 = vld [vmem:[#allocation5 + $0x8] sm:$0xff]
    %v143 = vld [vmem:[#allocation5 + $0x10] sm:$0x33]
    %v144 = vld [vmem:[%s2] sm:$0x3]
    %v146 = vlaneseq
    %v147 = vshrl.u32 %v146, 7
    %v148 = vsub.s32 0, %v147
    %v149 = vrot.slane %v144, %v148
    %v150 = vlaneseq
    %v151 = vshrl.u32 %v150, 7
    %v152 = vsub.s32 1, %v151
    %v153 = vrot.slane %v144, %v152
    %v159 = vunpack.c.l.b16 %v141
    %v160 = vunpack.c.h.b16 %v141
    %v161 = vunpack.c.l.b16 %v142
    %v162 = vunpack.c.h.b16 %v142
    %v163 = vunpack.c.l.b16 %v143
    %v164 = vunpack.c.h.b16 %v143
    %v165 = vpack.c.b16 %v161, %v159
    %v166 = vpack.c.b16 %v162, %v160
    %v167 = vpack.c.b16 %v163, %v163
    %v168 = vpack.c.b16 %v164, %v164
    %vm171 = vcmask 162816
    %v173 = vsel %vm171, %v140, 0
    %vm175 = vcmask 1041408
    %v177 = vsel %vm175, %v167, 0
    %v180 = vsel %vm175, %v168, 0
    %182 = vmatprep.subr.bf16.mxu0 0
    %183 = vmatpush1.bf16.msra.mxu0 0
    %184 = vmatprep.subr.bf16.mxu0 0
    %185 = vmatpush1.bf16.msra.mxu0 0
    %186 = vmatprep.subr.bf16.mxu0 0
    %187 = vmatpush1.bf16.msra.mxu0 0
    %188 = vmatprep.subr.bf16.mxu0 0
    %189 = vmatpush1.bf16.msra.mxu0 0
    %190 = vmatprep.subr.bf16.mxu0 0
    %191 = vmatpush1.bf16.msra.mxu0 0
    %192 = vmatprep.subr.bf16.mxu0 0
    %193 = vmatpush1.bf16.msra.mxu0 0
    %194 = vmatprep.subr.bf16.mxu0 %v180
    %195 = vmatpush1.bf16.msra.mxu0 %v177
    %196 = vmatprep.subr.bf16.mxu0 %v166
    %197 = vmatpush1.bf16.msra.mxu0 %v165
    %198 = vmatprep.subr.bf16.mxu0 0
    %199 = vmatpush2.bf16.msra.mxu0 0
    %200 = vmatprep.subr.bf16.mxu0 0
    %201 = vmatpush2.bf16.msra.mxu0 0
    %202 = vmatprep.subr.bf16.mxu0 0
    %203 = vmatpush2.bf16.msra.mxu0 0
    %204 = vmatprep.subr.bf16.mxu0 0
    %205 = vmatpush2.bf16.msra.mxu0 0
    %206 = vmatprep.subr.bf16.mxu0 0
    %207 = vmatpush2.bf16.msra.mxu0 0
    %208 = vmatprep.subr.bf16.mxu0 0
    %209 = vmatpush2.bf16.msra.mxu0 0
    %210 = vmatprep.subr.bf16.mxu0 0
    %211 = vmatpush2.bf16.msra.mxu0 0
    %212 = vmatprep.subr.bf16.mxu0 0
    %213 = vmatpush2.bf16.msra.mxu0 0
    %214 = vmatprep.mubr.bf16.mxu0 0
    %215 = vmatmul.mubr.bf16.gmra.mxu0 %v173
    %v216 = vpop.f32.mrf.mxu0
    %v217 = vadd.f32 %v149, %v216
    %v218 = vpop.f32.mrf.mxu0
    %v219 = vadd.f32 %v153, %v218
    %v220 = vpop.f32.mrf.mxu0
    %v221 = vpop.f32.mrf.mxu0
    %222 = vdwg.mxu0
    %v223 = vmul.f32 %v217, 0.5
    %v224 = vmul.f32 %v219, 0.5
    %v225 = vtanh.pop %v223
    %v226 = vtanh.pop %v224
    %v227 = vadd.f32 %v225, 1.0
    %v228 = vadd.f32 %v226, 1.0
    %v229 = vmul.f32 %v227, 0.5
    %v230 = vmul.f32 %v228, 0.5
    %v231 = vpack.c.bf16 %v229, %v229
    %v232 = vpack.c.bf16 %v230, %v230
    %v233 = vld [vmem:[#allocation7] sm:$0xff]
    %v234 = vld [vmem:[#allocation7 + $0x8] sm:$0xff]
    %v235 = vld [vmem:[#allocation7 + $0x10] sm:$0xff]
    %v236 = vld [vmem:[#allocation7 + $0x18] sm:$0xff]
    %v237 = vld [vmem:[#allocation7 + $0x20] sm:$0xff]
    %v238 = vld [vmem:[#allocation7 + $0x28] sm:$0xff]
    %v239 = vld [vmem:[#allocation7 + $0x30] sm:$0xff]
    %v240 = vld [vmem:[#allocation7 + $0x38] sm:$0xff]
    %v241 = vld [vmem:[#allocation7 + $0x40] sm:$0xff]
    %v242 = vld [vmem:[#allocation7 + $0x48] sm:$0xff]
    %v243 = vld [vmem:[#allocation7 + $0x50] sm:$0xff]
    %v244 = vld [vmem:[#allocation7 + $0x58] sm:$0xff]
    %v245 = vld [vmem:[#allocation7 + $0x60] sm:$0xff]
    %v246 = vld [vmem:[#allocation7 + $0x68] sm:$0xff]
    %v247 = vld [vmem:[#allocation7 + $0x70] sm:$0xff]
    %v248 = vld [vmem:[#allocation7 + $0x78] sm:$0xff]
    %v249 = vld [vmem:[#allocation7 + $0x80] sm:$0xff]
    %v250 = vld [vmem:[#allocation7 + $0x88] sm:$0xff]
    %v251 = vld [vmem:[#allocation7 + $0x90] sm:$0xff]
    %v252 = vld [vmem:[#allocation7 + $0x98] sm:$0xff]
    %v253 = vld [vmem:[#allocation7 + $0xa0] sm:$0xff]
    %v254 = vld [vmem:[#allocation7 + $0xa8] sm:$0xff]
    %v255 = vld [vmem:[#allocation7 + $0xb0] sm:$0xff]
    %v256 = vld [vmem:[#allocation7 + $0xb8] sm:$0xff]
    %v257 = vld [vmem:[#allocation7 + $0xc0] sm:$0xff]
    %v258 = vld [vmem:[#allocation7 + $0xc8] sm:$0xff]
    %v259 = vld [vmem:[#allocation7 + $0xd0] sm:$0xff]
    %v260 = vld [vmem:[#allocation7 + $0xd8] sm:$0xff]
    %v261 = vld [vmem:[#allocation7 + $0xe0] sm:$0xff]
    %v262 = vld [vmem:[#allocation7 + $0xe8] sm:$0xff]
    %v263 = vld [vmem:[#allocation7 + $0xf0] sm:$0xff]
    %v264 = vld [vmem:[#allocation7 + $0xf8] sm:$0xff]
    %v265 = vld [vmem:[%s4] sm:$0x3]
    %v267 = vlaneseq
    %v268 = vshrl.u32 %v267, 7
    %v269 = vsub.s32 0, %v268
    %v270 = vrot.slane %v265, %v269
    %v271 = vlaneseq
    %v272 = vshrl.u32 %v271, 7
    %v273 = vsub.s32 1, %v272
    %v274 = vrot.slane %v265, %v273
    %v309 = vunpack.c.l.b16 %v233
    %v310 = vunpack.c.h.b16 %v233
    %v311 = vunpack.c.l.b16 %v234
    %v312 = vunpack.c.h.b16 %v234
    %v313 = vunpack.c.l.b16 %v235
    %v314 = vunpack.c.h.b16 %v235
    %v315 = vunpack.c.l.b16 %v236
    %v316 = vunpack.c.h.b16 %v236
    %v317 = vunpack.c.l.b16 %v237
    %v318 = vunpack.c.h.b16 %v237
    %v319 = vunpack.c.l.b16 %v238
    %v320 = vunpack.c.h.b16 %v238
    %v321 = vunpack.c.l.b16 %v239
    %v322 = vunpack.c.h.b16 %v239
    %v323 = vunpack.c.l.b16 %v240
    %v324 = vunpack.c.h.b16 %v240
    %v325 = vunpack.c.l.b16 %v241
    %v326 = vunpack.c.h.b16 %v241
    %v327 = vunpack.c.l.b16 %v242
    %v328 = vunpack.c.h.b16 %v242
    %v329 = vunpack.c.l.b16 %v243
    %v330 = vunpack.c.h.b16 %v243
    %v331 = vunpack.c.l.b16 %v244
    %v332 = vunpack.c.h.b16 %v244
    %v333 = vunpack.c.l.b16 %v245
    %v334 = vunpack.c.h.b16 %v245
    %v335 = vunpack.c.l.b16 %v246
    %v336 = vunpack.c.h.b16 %v246
    %v337 = vunpack.c.l.b16 %v247
    %v338 = vunpack.c.h.b16 %v247
    %v339 = vunpack.c.l.b16 %v248
    %v340 = vunpack.c.h.b16 %v248
    %v341 = vunpack.c.l.b16 %v249
    %v342 = vunpack.c.h.b16 %v249
    %v343 = vunpack.c.l.b16 %v250
    %v344 = vunpack.c.h.b16 %v250
    %v345 = vunpack.c.l.b16 %v251
    %v346 = vunpack.c.h.b16 %v251
    %v347 = vunpack.c.l.b16 %v252
    %v348 = vunpack.c.h.b16 %v252
    %v349 = vunpack.c.l.b16 %v253
    %v350 = vunpack.c.h.b16 %v253
    %v351 = vunpack.c.l.b16 %v254
    %v352 = vunpack.c.h.b16 %v254
    %v353 = vunpack.c.l.b16 %v255
    %v354 = vunpack.c.h.b16 %v255
    %v355 = vunpack.c.l.b16 %v256
    %v356 = vunpack.c.h.b16 %v256
    %v357 = vunpack.c.l.b16 %v257
    %v358 = vunpack.c.h.b16 %v257
    %v359 = vunpack.c.l.b16 %v258
    %v360 = vunpack.c.h.b16 %v258
    %v361 = vunpack.c.l.b16 %v259
    %v362 = vunpack.c.h.b16 %v259
    %v363 = vunpack.c.l.b16 %v260
    %v364 = vunpack.c.h.b16 %v260
    %v365 = vunpack.c.l.b16 %v261
    %v366 = vunpack.c.h.b16 %v261
    %v367 = vunpack.c.l.b16 %v262
    %v368 = vunpack.c.h.b16 %v262
    %v369 = vunpack.c.l.b16 %v263
    %v370 = vunpack.c.h.b16 %v263
    %v371 = vunpack.c.l.b16 %v264
    %v372 = vunpack.c.h.b16 %v264
    %v373 = vpack.c.b16 %v311, %v309
    %v374 = vpack.c.b16 %v312, %v310
    %v375 = vpack.c.b16 %v315, %v313
    %v376 = vpack.c.b16 %v316, %v314
    %v377 = vpack.c.b16 %v319, %v317
    %v378 = vpack.c.b16 %v320, %v318
    %v379 = vpack.c.b16 %v323, %v321
    %v380 = vpack.c.b16 %v324, %v322
    %v381 = vpack.c.b16 %v327, %v325
    %v382 = vpack.c.b16 %v328, %v326
    %v383 = vpack.c.b16 %v331, %v329
    %v384 = vpack.c.b16 %v332, %v330
    %v385 = vpack.c.b16 %v335, %v333
    %v386 = vpack.c.b16 %v336, %v334
    %v387 = vpack.c.b16 %v339, %v337
    %v388 = vpack.c.b16 %v340, %v338
    %v389 = vpack.c.b16 %v343, %v341
    %v390 = vpack.c.b16 %v344, %v342
    %v391 = vpack.c.b16 %v347, %v345
    %v392 = vpack.c.b16 %v348, %v346
    %v393 = vpack.c.b16 %v351, %v349
    %v394 = vpack.c.b16 %v352, %v350
    %v395 = vpack.c.b16 %v355, %v353
    %v396 = vpack.c.b16 %v356, %v354
    %v397 = vpack.c.b16 %v359, %v357
    %v398 = vpack.c.b16 %v360, %v358
    %v399 = vpack.c.b16 %v363, %v361
    %v400 = vpack.c.b16 %v364, %v362
    %v401 = vpack.c.b16 %v367, %v365
    %v402 = vpack.c.b16 %v368, %v366
    %v403 = vpack.c.b16 %v371, %v369
    %v404 = vpack.c.b16 %v372, %v370
    %437 = vmatprep.subr.bf16.mxu0 %v388
    %438 = vmatpush1.bf16.msra.mxu0 %v387
    %439 = vmatprep.subr.bf16.mxu0 %v386
    %440 = vmatpush1.bf16.msra.mxu0 %v385
    %441 = vmatprep.subr.bf16.mxu0 %v384
    %442 = vmatpush1.bf16.msra.mxu0 %v383
    %443 = vmatprep.subr.bf16.mxu0 %v382
    %444 = vmatpush1.bf16.msra.mxu0 %v381
    %445 = vmatprep.subr.bf16.mxu0 %v380
    %446 = vmatpush1.bf16.msra.mxu0 %v379
    %447 = vmatprep.subr.bf16.mxu0 %v378
    %448 = vmatpush1.bf16.msra.mxu0 %v377
    %449 = vmatprep.subr.bf16.mxu0 %v376
    %450 = vmatpush1.bf16.msra.mxu0 %v375
    %451 = vmatprep.subr.bf16.mxu0 %v374
    %452 = vmatpush1.bf16.msra.mxu0 %v373
    %453 = vmatprep.subr.bf16.mxu0 %v404
    %454 = vmatpush2.bf16.msra.mxu0 %v403
    %455 = vmatprep.subr.bf16.mxu0 %v402
    %456 = vmatpush2.bf16.msra.mxu0 %v401
    %457 = vmatprep.subr.bf16.mxu0 %v400
    %458 = vmatpush2.bf16.msra.mxu0 %v399
    %459 = vmatprep.subr.bf16.mxu0 %v398
    %460 = vmatpush2.bf16.msra.mxu0 %v397
    %461 = vmatprep.subr.bf16.mxu0 %v396
    %462 = vmatpush2.bf16.msra.mxu0 %v395
    %463 = vmatprep.subr.bf16.mxu0 %v394
    %464 = vmatpush2.bf16.msra.mxu0 %v393
    %465 = vmatprep.subr.bf16.mxu0 %v392
    %466 = vmatpush2.bf16.msra.mxu0 %v391
    %467 = vmatprep.subr.bf16.mxu0 %v390
    %468 = vmatpush2.bf16.msra.mxu0 %v389
    %469 = vmatprep.mubr.bf16.mxu0 %v232
    %470 = vmatmul.mubr.bf16.gmra.mxu0 %v231
    %v471 = vpop.f32.mrf.mxu0
    %v472 = vadd.f32 %v270, %v471
    %v473 = vpop.f32.mrf.mxu0
    %v474 = vadd.f32 %v274, %v473
    %v475 = vpop.f32.mrf.mxu0
    %v476 = vpop.f32.mrf.mxu0
    %477 = vdwg.mxu0
    %v478 = vmul.f32 %v472, 0.5
    %v479 = vmul.f32 %v474, 0.5
    %v480 = vtanh.pop %v478
    %v481 = vtanh.pop %v479
    %v482 = vadd.f32 %v480, 1.0
    %v483 = vadd.f32 %v481, 1.0
    %v484 = vmul.f32 %v482, 0.5
    %v485 = vmul.f32 %v483, 0.5
    %v486 = vpack.c.bf16 %v484, %v484
    %v487 = vpack.c.bf16 %v485, %v485
    %v488 = vld [vmem:[#allocation8] sm:$0xff]
    %v489 = vld [vmem:[#allocation8 + $0x8] sm:$0xff]
    %v490 = vld [vmem:[#allocation8 + $0x10] sm:$0xff]
    %v491 = vld [vmem:[#allocation8 + $0x18] sm:$0xff]
    %v492 = vld [vmem:[#allocation8 + $0x20] sm:$0xff]
    %v493 = vld [vmem:[#allocation8 + $0x28] sm:$0xff]
    %v494 = vld [vmem:[#allocation8 + $0x30] sm:$0xff]
    %v495 = vld [vmem:[#allocation8 + $0x38] sm:$0xff]
    %v496 = vld [vmem:[#allocation8 + $0x40] sm:$0xff]
    %v497 = vld [vmem:[#allocation8 + $0x48] sm:$0xff]
    %v498 = vld [vmem:[#allocation8 + $0x50] sm:$0xff]
    %v499 = vld [vmem:[#allocation8 + $0x58] sm:$0xff]
    %v500 = vld [vmem:[#allocation8 + $0x60] sm:$0xff]
    %v501 = vld [vmem:[#allocation8 + $0x68] sm:$0xff]
    %v502 = vld [vmem:[#allocation8 + $0x70] sm:$0xff]
    %v503 = vld [vmem:[#allocation8 + $0x78] sm:$0xff]
    %v504 = vld [vmem:[#allocation8 + $0x80] sm:$0xff]
    %v505 = vld [vmem:[#allocation8 + $0x88] sm:$0xff]
    %v506 = vld [vmem:[#allocation8 + $0x90] sm:$0xff]
    %v507 = vld [vmem:[#allocation8 + $0x98] sm:$0xff]
    %v508 = vld [vmem:[#allocation8 + $0xa0] sm:$0xff]
    %v509 = vld [vmem:[#allocation8 + $0xa8] sm:$0xff]
    %v510 = vld [vmem:[#allocation8 + $0xb0] sm:$0xff]
    %v511 = vld [vmem:[#allocation8 + $0xb8] sm:$0xff]
    %v512 = vld [vmem:[#allocation8 + $0xc0] sm:$0xff]
    %v513 = vld [vmem:[#allocation8 + $0xc8] sm:$0xff]
    %v514 = vld [vmem:[#allocation8 + $0xd0] sm:$0xff]
    %v515 = vld [vmem:[#allocation8 + $0xd8] sm:$0xff]
    %v516 = vld [vmem:[#allocation8 + $0xe0] sm:$0xff]
    %v517 = vld [vmem:[#allocation8 + $0xe8] sm:$0xff]
    %v518 = vld [vmem:[#allocation8 + $0xf0] sm:$0xff]
    %v519 = vld [vmem:[#allocation8 + $0xf8] sm:$0xff]
    %v520 = vld [vmem:[%s6] sm:$0x3]
    %v522 = vlaneseq
    %v523 = vshrl.u32 %v522, 7
    %v524 = vsub.s32 0, %v523
    %v525 = vrot.slane %v520, %v524
    %v526 = vlaneseq
    %v527 = vshrl.u32 %v526, 7
    %v528 = vsub.s32 1, %v527
    %v529 = vrot.slane %v520, %v528
    %v564 = vunpack.c.l.b16 %v488
    %v565 = vunpack.c.h.b16 %v488
    %v566 = vunpack.c.l.b16 %v489
    %v567 = vunpack.c.h.b16 %v489
    %v568 = vunpack.c.l.b16 %v490
    %v569 = vunpack.c.h.b16 %v490
    %v570 = vunpack.c.l.b16 %v491
    %v571 = vunpack.c.h.b16 %v491
    %v572 = vunpack.c.l.b16 %v492
    %v573 = vunpack.c.h.b16 %v492
    %v574 = vunpack.c.l.b16 %v493
    %v575 = vunpack.c.h.b16 %v493
    %v576 = vunpack.c.l.b16 %v494
    %v577 = vunpack.c.h.b16 %v494
    %v578 = vunpack.c.l.b16 %v495
    %v579 = vunpack.c.h.b16 %v495
    %v580 = vunpack.c.l.b16 %v496
    %v581 = vunpack.c.h.b16 %v496
    %v582 = vunpack.c.l.b16 %v497
    %v583 = vunpack.c.h.b16 %v497
    %v584 = vunpack.c.l.b16 %v498
    %v585 = vunpack.c.h.b16 %v498
    %v586 = vunpack.c.l.b16 %v499
    %v587 = vunpack.c.h.b16 %v499
    %v588 = vunpack.c.l.b16 %v500
    %v589 = vunpack.c.h.b16 %v500
    %v590 = vunpack.c.l.b16 %v501
    %v591 = vunpack.c.h.b16 %v501
    %v592 = vunpack.c.l.b16 %v502
    %v593 = vunpack.c.h.b16 %v502
    %v594 = vunpack.c.l.b16 %v503
    %v595 = vunpack.c.h.b16 %v503
    %v596 = vunpack.c.l.b16 %v504
    %v597 = vunpack.c.h.b16 %v504
    %v598 = vunpack.c.l.b16 %v505
    %v599 = vunpack.c.h.b16 %v505
    %v600 = vunpack.c.l.b16 %v506
    %v601 = vunpack.c.h.b16 %v506
    %v602 = vunpack.c.l.b16 %v507
    %v603 = vunpack.c.h.b16 %v507
    %v604 = vunpack.c.l.b16 %v508
    %v605 = vunpack.c.h.b16 %v508
    %v606 = vunpack.c.l.b16 %v509
    %v607 = vunpack.c.h.b16 %v509
    %v608 = vunpack.c.l.b16 %v510
    %v609 = vunpack.c.h.b16 %v510
    %v610 = vunpack.c.l.b16 %v511
    %v611 = vunpack.c.h.b16 %v511
    %v612 = vunpack.c.l.b16 %v512
    %v613 = vunpack.c.h.b16 %v512
    %v614 = vunpack.c.l.b16 %v513
    %v615 = vunpack.c.h.b16 %v513
    %v616 = vunpack.c.l.b16 %v514
    %v617 = vunpack.c.h.b16 %v514
    %v618 = vunpack.c.l.b16 %v515
    %v619 = vunpack.c.h.b16 %v515
    %v620 = vunpack.c.l.b16 %v516
    %v621 = vunpack.c.h.b16 %v516
    %v622 = vunpack.c.l.b16 %v517
    %v623 = vunpack.c.h.b16 %v517
    %v624 = vunpack.c.l.b16 %v518
    %v625 = vunpack.c.h.b16 %v518
    %v626 = vunpack.c.l.b16 %v519
    %v627 = vunpack.c.h.b16 %v519
    %v628 = vpack.c.b16 %v566, %v564
    %v629 = vpack.c.b16 %v567, %v565
    %v630 = vpack.c.b16 %v570, %v568
    %v631 = vpack.c.b16 %v571, %v569
    %v632 = vpack.c.b16 %v574, %v572
    %v633 = vpack.c.b16 %v575, %v573
    %v634 = vpack.c.b16 %v578, %v576
    %v635 = vpack.c.b16 %v579, %v577
    %v636 = vpack.c.b16 %v582, %v580
    %v637 = vpack.c.b16 %v583, %v581
    %v638 = vpack.c.b16 %v586, %v584
    %v639 = vpack.c.b16 %v587, %v585
    %v640 = vpack.c.b16 %v590, %v588
    %v641 = vpack.c.b16 %v591, %v589
    %v642 = vpack.c.b16 %v594, %v592
    %v643 = vpack.c.b16 %v595, %v593
    %v644 = vpack.c.b16 %v598, %v596
    %v645 = vpack.c.b16 %v599, %v597
    %v646 = vpack.c.b16 %v602, %v600
    %v647 = vpack.c.b16 %v603, %v601
    %v648 = vpack.c.b16 %v606, %v604
    %v649 = vpack.c.b16 %v607, %v605
    %v650 = vpack.c.b16 %v610, %v608
    %v651 = vpack.c.b16 %v611, %v609
    %v652 = vpack.c.b16 %v614, %v612
    %v653 = vpack.c.b16 %v615, %v613
    %v654 = vpack.c.b16 %v618, %v616
    %v655 = vpack.c.b16 %v619, %v617
    %v656 = vpack.c.b16 %v622, %v620
    %v657 = vpack.c.b16 %v623, %v621
    %v658 = vpack.c.b16 %v626, %v624
    %v659 = vpack.c.b16 %v627, %v625
    %692 = vmatprep.subr.bf16.mxu0 %v643
    %693 = vmatpush1.bf16.msra.mxu0 %v642
    %694 = vmatprep.subr.bf16.mxu0 %v641
    %695 = vmatpush1.bf16.msra.mxu0 %v640
    %696 = vmatprep.subr.bf16.mxu0 %v639
    %697 = vmatpush1.bf16.msra.mxu0 %v638
    %698 = vmatprep.subr.bf16.mxu0 %v637
    %699 = vmatpush1.bf16.msra.mxu0 %v636
    %700 = vmatprep.subr.bf16.mxu0 %v635
    %701 = vmatpush1.bf16.msra.mxu0 %v634
    %702 = vmatprep.subr.bf16.mxu0 %v633
    %703 = vmatpush1.bf16.msra.mxu0 %v632
    %704 = vmatprep.subr.bf16.mxu0 %v631
    %705 = vmatpush1.bf16.msra.mxu0 %v630
    %706 = vmatprep.subr.bf16.mxu0 %v629
    %707 = vmatpush1.bf16.msra.mxu0 %v628
    %708 = vmatprep.subr.bf16.mxu0 %v659
    %709 = vmatpush2.bf16.msra.mxu0 %v658
    %710 = vmatprep.subr.bf16.mxu0 %v657
    %711 = vmatpush2.bf16.msra.mxu0 %v656
    %712 = vmatprep.subr.bf16.mxu0 %v655
    %713 = vmatpush2.bf16.msra.mxu0 %v654
    %714 = vmatprep.subr.bf16.mxu0 %v653
    %715 = vmatpush2.bf16.msra.mxu0 %v652
    %716 = vmatprep.subr.bf16.mxu0 %v651
    %717 = vmatpush2.bf16.msra.mxu0 %v650
    %718 = vmatprep.subr.bf16.mxu0 %v649
    %719 = vmatpush2.bf16.msra.mxu0 %v648
    %720 = vmatprep.subr.bf16.mxu0 %v647
    %721 = vmatpush2.bf16.msra.mxu0 %v646
    %722 = vmatprep.subr.bf16.mxu0 %v645
    %723 = vmatpush2.bf16.msra.mxu0 %v644
    %724 = vmatprep.mubr.bf16.mxu0 %v487
    %725 = vmatmul.mubr.bf16.gmra.mxu0 %v486
    %v726 = vpop.f32.mrf.mxu0
    %v727 = vadd.f32 %v525, %v726
    %v728 = vpop.f32.mrf.mxu0
    %v729 = vadd.f32 %v529, %v728
    %v730 = vpop.f32.mrf.mxu0
    %v731 = vpop.f32.mrf.mxu0
    %732 = vdwg.mxu0
    %v733 = vmul.f32 %v727, 0.5
    %v734 = vmul.f32 %v729, 0.5
    %v735 = vtanh.pop %v733
    %v736 = vtanh.pop %v734
    %v737 = vadd.f32 %v735, 1.0
    %v738 = vadd.f32 %v736, 1.0
    %v739 = vmul.f32 %v737, 0.5
    %v740 = vmul.f32 %v738, 0.5
    %v741 = vpack.c.bf16 %v739, %v739
    %v742 = vpack.c.bf16 %v740, %v740
    %v743 = vld [vmem:[#allocation10] sm:$0xf]
    %v744 = vld [vmem:[#allocation10 + $0x4] sm:$0xf]
    %v745 = vld [vmem:[#allocation10 + $0x8] sm:$0xf]
    %v746 = vld [vmem:[#allocation10 + $0xc] sm:$0xf]
    %v747 = vld [vmem:[#allocation10 + $0x10] sm:$0xf]
    %v748 = vld [vmem:[#allocation10 + $0x14] sm:$0xf]
    %v749 = vld [vmem:[#allocation10 + $0x18] sm:$0xf]
    %v750 = vld [vmem:[#allocation10 + $0x1c] sm:$0xf]
    %v751 = vld [vmem:[#allocation10 + $0x20] sm:$0xf]
    %v752 = vld [vmem:[#allocation10 + $0x24] sm:$0xf]
    %v753 = vld [vmem:[#allocation10 + $0x28] sm:$0xf]
    %v754 = vld [vmem:[#allocation10 + $0x2c] sm:$0xf]
    %v755 = vld [vmem:[#allocation10 + $0x30] sm:$0xf]
    %v756 = vld [vmem:[#allocation10 + $0x34] sm:$0xf]
    %v757 = vld [vmem:[#allocation10 + $0x38] sm:$0xf]
    %v758 = vld [vmem:[#allocation10 + $0x3c] sm:$0xf]
    %v759 = vld [vmem:[#allocation10 + $0x40] sm:$0xf]
    %v760 = vld [vmem:[#allocation10 + $0x44] sm:$0xf]
    %v761 = vld [vmem:[#allocation10 + $0x48] sm:$0xf]
    %v762 = vld [vmem:[#allocation10 + $0x4c] sm:$0xf]
    %v763 = vld [vmem:[#allocation10 + $0x50] sm:$0xf]
    %v764 = vld [vmem:[#allocation10 + $0x54] sm:$0xf]
    %v765 = vld [vmem:[#allocation10 + $0x58] sm:$0xf]
    %v766 = vld [vmem:[#allocation10 + $0x5c] sm:$0xf]
    %v767 = vld [vmem:[#allocation10 + $0x60] sm:$0xf]
    %v768 = vld [vmem:[#allocation10 + $0x64] sm:$0xf]
    %v769 = vld [vmem:[#allocation10 + $0x68] sm:$0xf]
    %v770 = vld [vmem:[#allocation10 + $0x6c] sm:$0xf]
    %v771 = vld [vmem:[#allocation10 + $0x70] sm:$0xf]
    %v772 = vld [vmem:[#allocation10 + $0x74] sm:$0xf]
    %v773 = vld [vmem:[#allocation10 + $0x78] sm:$0xf]
    %v774 = vld [vmem:[#allocation10 + $0x7c] sm:$0xf]
    %v775 = vld [vmem:[%s8] sm:$0x1]
    %v777 = vlaneseq
    %v778 = vshrl.u32 %v777, 7
    %v779 = vsub.s32 0, %v778
    %v780 = vrot.slane %v775, %v779
    %v814 = vunpack.c.l.b16 %v743
    %v815 = vunpack.c.l.b16 %v744
    %v816 = vunpack.c.l.b16 %v745
    %v817 = vunpack.c.l.b16 %v746
    %v818 = vunpack.c.l.b16 %v747
    %v819 = vunpack.c.l.b16 %v748
    %v820 = vunpack.c.l.b16 %v749
    %v821 = vunpack.c.l.b16 %v750
    %v822 = vunpack.c.l.b16 %v751
    %v823 = vunpack.c.l.b16 %v752
    %v824 = vunpack.c.l.b16 %v753
    %v825 = vunpack.c.l.b16 %v754
    %v826 = vunpack.c.l.b16 %v755
    %v827 = vunpack.c.l.b16 %v756
    %v828 = vunpack.c.l.b16 %v757
    %v829 = vunpack.c.l.b16 %v758
    %v830 = vunpack.c.l.b16 %v759
    %v831 = vunpack.c.l.b16 %v760
    %v832 = vunpack.c.l.b16 %v761
    %v833 = vunpack.c.l.b16 %v762
    %v834 = vunpack.c.l.b16 %v763
    %v835 = vunpack.c.l.b16 %v764
    %v836 = vunpack.c.l.b16 %v765
    %v837 = vunpack.c.l.b16 %v766
    %v838 = vunpack.c.l.b16 %v767
    %v839 = vunpack.c.l.b16 %v768
    %v840 = vunpack.c.l.b16 %v769
    %v841 = vunpack.c.l.b16 %v770
    %v842 = vunpack.c.l.b16 %v771
    %v843 = vunpack.c.l.b16 %v772
    %v844 = vunpack.c.l.b16 %v773
    %v845 = vunpack.c.l.b16 %v774
    %v846 = vpack.c.b16 %v815, %v814
    %v847 = vpack.c.b16 %v817, %v816
    %v848 = vpack.c.b16 %v819, %v818
    %v849 = vpack.c.b16 %v821, %v820
    %v850 = vpack.c.b16 %v823, %v822
    %v851 = vpack.c.b16 %v825, %v824
    %v852 = vpack.c.b16 %v827, %v826
    %v853 = vpack.c.b16 %v829, %v828
    %v854 = vpack.c.b16 %v831, %v830
    %v855 = vpack.c.b16 %v833, %v832
    %v856 = vpack.c.b16 %v835, %v834
    %v857 = vpack.c.b16 %v837, %v836
    %v858 = vpack.c.b16 %v839, %v838
    %v859 = vpack.c.b16 %v841, %v840
    %v860 = vpack.c.b16 %v843, %v842
    %v861 = vpack.c.b16 %v845, %v844
    %878 = vmatprep.subr.bf16.mxu0 0
    %879 = vmatpush1.bf16.msra.mxu0 %v853
    %880 = vmatprep.subr.bf16.mxu0 0
    %881 = vmatpush1.bf16.msra.mxu0 %v852
    %882 = vmatprep.subr.bf16.mxu0 0
    %883 = vmatpush1.bf16.msra.mxu0 %v851
    %884 = vmatprep.subr.bf16.mxu0 0
    %885 = vmatpush1.bf16.msra.mxu0 %v850
    %886 = vmatprep.subr.bf16.mxu0 0
    %887 = vmatpush1.bf16.msra.mxu0 %v849
    %888 = vmatprep.subr.bf16.mxu0 0
    %889 = vmatpush1.bf16.msra.mxu0 %v848
    %890 = vmatprep.subr.bf16.mxu0 0
    %891 = vmatpush1.bf16.msra.mxu0 %v847
    %892 = vmatprep.subr.bf16.mxu0 0
    %893 = vmatpush1.bf16.msra.mxu0 %v846
    %894 = vmatprep.subr.bf16.mxu0 0
    %895 = vmatpush2.bf16.msra.mxu0 %v861
    %896 = vmatprep.subr.bf16.mxu0 0
    %897 = vmatpush2.bf16.msra.mxu0 %v860
    %898 = vmatprep.subr.bf16.mxu0 0
    %899 = vmatpush2.bf16.msra.mxu0 %v859
    %900 = vmatprep.subr.bf16.mxu0 0
    %901 = vmatpush2.bf16.msra.mxu0 %v858
    %902 = vmatprep.subr.bf16.mxu0 0
    %903 = vmatpush2.bf16.msra.mxu0 %v857
    %904 = vmatprep.subr.bf16.mxu0 0
    %905 = vmatpush2.bf16.msra.mxu0 %v856
    %906 = vmatprep.subr.bf16.mxu0 0
    %907 = vmatpush2.bf16.msra.mxu0 %v855
    %908 = vmatprep.subr.bf16.mxu0 0
    %909 = vmatpush2.bf16.msra.mxu0 %v854
    %910 = vmatprep.mubr.bf16.mxu0 %v742
    %911 = vmatmul.mubr.bf16.gmra.mxu0 %v741
    %v912 = vpop.f32.mrf.mxu0
    %v913 = vadd.f32 %v780, %v912
    %v914 = vpop.f32.mrf.mxu0
    %v915 = vpop.f32.mrf.mxu0
    %v916 = vpop.f32.mrf.mxu0
    %917 = vdwg.mxu0
    %v918 = vmul.f32 %v913, 0.5
    %v919 = vtanh.pop %v918
    %v920 = vadd.f32 %v919, 1.0
    %v921 = vmul.f32 %v920, 0.5
    %v922 = vpack.c.bf16 %v921, %v921
    %v923 = vld [vmem:[#allocation11] sm:$0xf]
    %v924 = vld [vmem:[#allocation11 + $0x4] sm:$0xf]
    %v925 = vld [vmem:[#allocation11 + $0x8] sm:$0xf]
    %v926 = vld [vmem:[#allocation11 + $0xc] sm:$0xf]
    %v927 = vld [vmem:[#allocation11 + $0x10] sm:$0xf]
    %v928 = vld [vmem:[#allocation11 + $0x14] sm:$0xf]
    %v929 = vld [vmem:[#allocation11 + $0x18] sm:$0xf]
    %v930 = vld [vmem:[#allocation11 + $0x1c] sm:$0xf]
    %v931 = vld [vmem:[#allocation11 + $0x20] sm:$0xf]
    %v932 = vld [vmem:[#allocation11 + $0x24] sm:$0xf]
    %v933 = vld [vmem:[#allocation11 + $0x28] sm:$0xf]
    %v934 = vld [vmem:[#allocation11 + $0x2c] sm:$0xf]
    %v935 = vld [vmem:[#allocation11 + $0x30] sm:$0xf]
    %v936 = vld [vmem:[#allocation11 + $0x34] sm:$0xf]
    %v937 = vld [vmem:[#allocation11 + $0x38] sm:$0xf]
    %v938 = vld [vmem:[#allocation11 + $0x3c] sm:$0xf]
    %v939 = vld [vmem:[%s10] sm:$0x1]
    %v941 = vlaneseq
    %v942 = vshrl.u32 %v941, 7
    %v943 = vsub.s32 0, %v942
    %v944 = vrot.slane %v939, %v943
    %v962 = vunpack.c.l.b16 %v923
    %v963 = vunpack.c.l.b16 %v924
    %v964 = vunpack.c.l.b16 %v925
    %v965 = vunpack.c.l.b16 %v926
    %v966 = vunpack.c.l.b16 %v927
    %v967 = vunpack.c.l.b16 %v928
    %v968 = vunpack.c.l.b16 %v929
    %v969 = vunpack.c.l.b16 %v930
    %v970 = vunpack.c.l.b16 %v931
    %v971 = vunpack.c.l.b16 %v932
    %v972 = vunpack.c.l.b16 %v933
    %v973 = vunpack.c.l.b16 %v934
    %v974 = vunpack.c.l.b16 %v935
    %v975 = vunpack.c.l.b16 %v936
    %v976 = vunpack.c.l.b16 %v937
    %v977 = vunpack.c.l.b16 %v938
    %v978 = vpack.c.b16 %v963, %v962
    %v979 = vpack.c.b16 %v965, %v964
    %v980 = vpack.c.b16 %v967, %v966
    %v981 = vpack.c.b16 %v969, %v968
    %v982 = vpack.c.b16 %v971, %v970
    %v983 = vpack.c.b16 %v973, %v972
    %v984 = vpack.c.b16 %v975, %v974
    %v985 = vpack.c.b16 %v977, %v976
    %994 = vmatprep.subr.bf16.mxu0 0
    %995 = vmatpush1.bf16.msra.mxu0 %v985
    %996 = vmatprep.subr.bf16.mxu0 0
    %997 = vmatpush1.bf16.msra.mxu0 %v984
    %998 = vmatprep.subr.bf16.mxu0 0
    %999 = vmatpush1.bf16.msra.mxu0 %v983
    %1000 = vmatprep.subr.bf16.mxu0 0
    %1001 = vmatpush1.bf16.msra.mxu0 %v982
    %1002 = vmatprep.subr.bf16.mxu0 0
    %1003 = vmatpush1.bf16.msra.mxu0 %v981
    %1004 = vmatprep.subr.bf16.mxu0 0
    %1005 = vmatpush1.bf16.msra.mxu0 %v980
    %1006 = vmatprep.subr.bf16.mxu0 0
    %1007 = vmatpush1.bf16.msra.mxu0 %v979
    %1008 = vmatprep.subr.bf16.mxu0 0
    %1009 = vmatpush1.bf16.msra.mxu0 %v978
    %1010 = vmatprep.subr.bf16.mxu0 0
    %1011 = vmatpush2.bf16.msra.mxu0 0
    %1012 = vmatprep.subr.bf16.mxu0 0
    %1013 = vmatpush2.bf16.msra.mxu0 0
    %1014 = vmatprep.subr.bf16.mxu0 0
    %1015 = vmatpush2.bf16.msra.mxu0 0
    %1016 = vmatprep.subr.bf16.mxu0 0
    %1017 = vmatpush2.bf16.msra.mxu0 0
    %1018 = vmatprep.subr.bf16.mxu0 0
    %1019 = vmatpush2.bf16.msra.mxu0 0
    %1020 = vmatprep.subr.bf16.mxu0 0
    %1021 = vmatpush2.bf16.msra.mxu0 0
    %1022 = vmatprep.subr.bf16.mxu0 0
    %1023 = vmatpush2.bf16.msra.mxu0 0
    %1024 = vmatprep.subr.bf16.mxu0 0
    %1025 = vmatpush2.bf16.msra.mxu0 0
    %1026 = vmatprep.mubr.bf16.mxu0 0
    %1027 = vmatmul.mubr.bf16.gmra.mxu0 %v922
    %v1028 = vpop.f32.mrf.mxu0
    %v1029 = vadd.f32 %v944, %v1028
    %v1030 = vpop.f32.mrf.mxu0
    %v1031 = vpop.f32.mrf.mxu0
    %v1032 = vpop.f32.mrf.mxu0
    %1033 = vdwg.mxu0
    %v1034 = vmul.f32 %v1029, 0.5
    %v1035 = vtanh.pop %v1034
    %v1036 = vadd.f32 %v1035, 1.0
    %v1037 = vmul.f32 %v1036, 0.5
    %v1038 = vpack.c.bf16 %v1037, %v1037
    %v1039 = vld [vmem:[#allocation13] sm:$0xf]
    %v1040 = vld [vmem:[#allocation13 + $0x4] sm:$0xf]
    %v1041 = vld [vmem:[#allocation13 + $0x8] sm:$0xf]
    %v1042 = vld [vmem:[#allocation13 + $0xc] sm:$0xf]
    %v1043 = vld [vmem:[#allocation13 + $0x10] sm:$0xf]
    %v1044 = vld [vmem:[#allocation13 + $0x14] sm:$0xf]
    %v1045 = vld [vmem:[#allocation13 + $0x18] sm:$0xf]
    %v1046 = vld [vmem:[#allocation13 + $0x1c] sm:$0xf]
    %v1047 = vld [vmem:[#allocation13 + $0x20] sm:$0xf]
    %v1048 = vld [vmem:[#allocation13 + $0x24] sm:$0xf]
    %v1049 = vld [vmem:[#allocation13 + $0x28] sm:$0xf]
    %v1050 = vld [vmem:[#allocation13 + $0x2c] sm:$0xf]
    %v1051 = vld [vmem:[#allocation13 + $0x30] sm:$0xf]
    %v1052 = vld [vmem:[#allocation13 + $0x34] sm:$0xf]
    %v1053 = vld [vmem:[#allocation13 + $0x38] sm:$0xf]
    %v1054 = vld [vmem:[#allocation13 + $0x3c] sm:$0xf]
    %v1055 = vld [vmem:[%s12] sm:$0x1]
    %v1057 = vlaneseq
    %v1058 = vshrl.u32 %v1057, 7
    %v1059 = vsub.s32 0, %v1058
    %v1060 = vrot.slane %v1055, %v1059
    %v1078 = vunpack.c.l.b16 %v1039
    %v1079 = vunpack.c.l.b16 %v1040
    %v1080 = vunpack.c.l.b16 %v1041
    %v1081 = vunpack.c.l.b16 %v1042
    %v1082 = vunpack.c.l.b16 %v1043
    %v1083 = vunpack.c.l.b16 %v1044
    %v1084 = vunpack.c.l.b16 %v1045
    %v1085 = vunpack.c.l.b16 %v1046
    %v1086 = vunpack.c.l.b16 %v1047
    %v1087 = vunpack.c.l.b16 %v1048
    %v1088 = vunpack.c.l.b16 %v1049
    %v1089 = vunpack.c.l.b16 %v1050
    %v1090 = vunpack.c.l.b16 %v1051
    %v1091 = vunpack.c.l.b16 %v1052
    %v1092 = vunpack.c.l.b16 %v1053
    %v1093 = vunpack.c.l.b16 %v1054
    %v1094 = vpack.c.b16 %v1079, %v1078
    %v1095 = vpack.c.b16 %v1081, %v1080
    %v1096 = vpack.c.b16 %v1083, %v1082
    %v1097 = vpack.c.b16 %v1085, %v1084
    %v1098 = vpack.c.b16 %v1087, %v1086
    %v1099 = vpack.c.b16 %v1089, %v1088
    %v1100 = vpack.c.b16 %v1091, %v1090
    %v1101 = vpack.c.b16 %v1093, %v1092
    %1110 = vmatprep.subr.bf16.mxu0 0
    %1111 = vmatpush1.bf16.msra.mxu0 %v1101
    %1112 = vmatprep.subr.bf16.mxu0 0
    %1113 = vmatpush1.bf16.msra.mxu0 %v1100
    %1114 = vmatprep.subr.bf16.mxu0 0
    %1115 = vmatpush1.bf16.msra.mxu0 %v1099
    %1116 = vmatprep.subr.bf16.mxu0 0
    %1117 = vmatpush1.bf16.msra.mxu0 %v1098
    %1118 = vmatprep.subr.bf16.mxu0 0
    %1119 = vmatpush1.bf16.msra.mxu0 %v1097
    %1120 = vmatprep.subr.bf16.mxu0 0
    %1121 = vmatpush1.bf16.msra.mxu0 %v1096
    %1122 = vmatprep.subr.bf16.mxu0 0
    %1123 = vmatpush1.bf16.msra.mxu0 %v1095
    %1124 = vmatprep.subr.bf16.mxu0 0
    %1125 = vmatpush1.bf16.msra.mxu0 %v1094
    %1126 = vmatprep.subr.bf16.mxu0 0
    %1127 = vmatpush2.bf16.msra.mxu0 0
    %1128 = vmatprep.subr.bf16.mxu0 0
    %1129 = vmatpush2.bf16.msra.mxu0 0
    %1130 = vmatprep.subr.bf16.mxu0 0
    %1131 = vmatpush2.bf16.msra.mxu0 0
    %1132 = vmatprep.subr.bf16.mxu0 0
    %1133 = vmatpush2.bf16.msra.mxu0 0
    %1134 = vmatprep.subr.bf16.mxu0 0
    %1135 = vmatpush2.bf16.msra.mxu0 0
    %1136 = vmatprep.subr.bf16.mxu0 0
    %1137 = vmatpush2.bf16.msra.mxu0 0
    %1138 = vmatprep.subr.bf16.mxu0 0
    %1139 = vmatpush2.bf16.msra.mxu0 0
    %1140 = vmatprep.subr.bf16.mxu0 0
    %1141 = vmatpush2.bf16.msra.mxu0 0
    %1142 = vmatprep.mubr.bf16.mxu0 0
    %1143 = vmatmul.mubr.bf16.gmra.mxu0 %v1038
    %v1144 = vpop.f32.mrf.mxu0
    %v1145 = vadd.f32 %v1060, %v1144
    %v1146 = vpop.f32.mrf.mxu0
    %v1147 = vpop.f32.mrf.mxu0
    %v1148 = vpop.f32.mrf.mxu0
    %1149 = vdwg.mxu0
    %1150 = vst [vmem:[#allocation14] sm:$0xff] %v1145
    // Predicated region
    $region82: #{tpu_custom_call.1} parent=1 // pred_check
      _
    $region83: #{tpu_custom_call.1} parent=1 // pred_check_branch
      %1152 = sbr.rel (0) target = $region85
    $region84: #{tpu_custom_call.1} parent=1 // pred_region
      %s1154 = ssub.s32 128, 128
      %1155 = vsyncadd [#allocation4], %s1154
      %s1157 = sshll.u32 [#allocation14], 4
      %s1158 = int_to_ptr.vmem [resolvable:$true] %s1157
      %1160 = dma.vmem_to_hbm [thread:$0]  %s1158, 128, %s13, [#allocation4]
    $region85: #{tpu_custom_call.1} parent=1 // pred_fallthru
      _
    // Predicated region
    $region86: #{tpu_custom_call.1} parent=1 // pred_check
      _
    $region87: #{tpu_custom_call.1} parent=1 // pred_check_branch
      %1162 = sbr.rel (0) target = $region89
    $region88: #{tpu_custom_call.1} parent=1 // pred_region
      %1163 = dma.done [#allocation4], 128
    $region89: #{tpu_custom_call.1} parent=1 // pred_fallthru
      _
    %1164 = vsyncpa [#allocation3], 1
    %1165 = vsyncpa [#allocation6], 1
    %1166 = vsyncpa [#allocation9], 1
    %1167 = vsyncpa [#allocation12], 1
    %1168 = vsyncpa [#allocation4], 1

</llo_original>
